<compile_context>
chip_gen: v7x
topology: tpu7x:2x2x1
jax: 0.10.0
libtpu: 0.0.40
codegen_flags: <defaults>
</compile_context>

<pallas_src>
import jax
import jax.numpy as jnp
from jax.experimental import pallas as pl
from jax.experimental.pallas import tpu as pltpu


def _coordconv_gemm_kernel(w_ref, b_ref, p_ref, o_ref):
    # w_ref: (Cout, Kc_pad)  fused conv weights (all taps folded into contraction)
    # b_ref: (Cout, 1)       bias column (f32)
    # p_ref: (Kc_pad, TN)    im2col patch tile, flattened spatial on lanes
    # o_ref: (Cout, TN)      lane-dense output tile
    acc = jnp.dot(w_ref[...], p_ref[...], preferred_element_type=jnp.float32)
    o_ref[...] = (acc + b_ref[...]).astype(o_ref.dtype)


def coord_conv2d(x_nchw, weight, bias, *, padding=1, tile_n=1024,
                 compute_dtype=None):
    """CoordConv2d forward: AddCoords (+1 y/H coord channel) then Conv2d(stride=1)."""
    B, C, H, W = x_nchw.shape
    Cout, Cin, K, K2 = weight.shape
    assert K == K2 and Cin == C + 1

    # --- AddCoords: extra channel value at (h, w) is h / H (matches the PyTorch code).
    yy = (jnp.arange(H, dtype=x_nchw.dtype) / H)[None, None, :, None]
    yy = jnp.broadcast_to(yy, (B, 1, H, W))
    xc = jnp.concatenate([x_nchw, yy], axis=1)                     # (B, Cin, H, W)

    # --- wrapper-side layout glue: zero-pad spatially, then channel-major im2col
    # with the K*K taps folded into the contraction axis.
    xp = jnp.pad(xc, ((0, 0), (0, 0),
                      (padding, padding), (padding, padding)))     # (B, Cin, Hp, Wp)
    Ho = H + 2 * padding - K + 1
    Wo = W + 2 * padding - K + 1
    N = B * Ho * Wo

    taps = []
    for kh in range(K):
        for kw in range(K):
            taps.append(xp[:, :, kh:kh + Ho, kw:kw + Wo])          # (B, Cin, Ho, Wo)
    pat = jnp.stack(taps, axis=0).reshape(K, K, B, Cin, Ho, Wo)
    pat = jnp.transpose(pat, (3, 0, 1, 2, 4, 5))                   # (Cin, K, K, B, Ho, Wo)
    patches = pat.reshape(Cin * K * K, N)                          # (Kc, N), spatial on lanes

    w_fused = weight.reshape(Cout, Cin * K * K)                    # (Cout, Kc)
    b_col = bias.astype(jnp.float32).reshape(Cout, 1)

    # Pad the contraction dim to an f32 sublane multiple (8)...
    Kc = Cin * K * K
    Kc_pad = -(-Kc // 8) * 8
    if Kc_pad != Kc:
        patches = jnp.pad(patches, ((0, Kc_pad - Kc), (0, 0)))
        w_fused = jnp.pad(w_fused, ((0, 0), (0, Kc_pad - Kc)))

    # ...and the flattened spatial dim to a lane-dense tile multiple (no
    # divisibility assert: remainder positions are zero-padded and sliced off).
    tile_n = max(128, (int(tile_n) // 128) * 128)
    tile_n = min(tile_n, -(-N // 128) * 128)
    N_pad = -(-N // tile_n) * tile_n
    if N_pad != N:
        patches = jnp.pad(patches, ((0, 0), (0, N_pad - N)))

    if compute_dtype is not None:  # e.g. jnp.bfloat16 on v6e/v7x (f32 accumulate)
        patches = patches.astype(compute_dtype)
        w_fused = w_fused.astype(compute_dtype)

    grid = (N_pad // tile_n,)
    out_flat = pl.pallas_call(
        _coordconv_gemm_kernel,
        out_shape=jax.ShapeDtypeStruct((Cout, N_pad), jnp.float32),
        grid_spec=pltpu.PrefetchScalarGridSpec(
            num_scalar_prefetch=0,
            grid=grid,
            in_specs=[
                pl.BlockSpec((Cout, Kc_pad), lambda i: (0, 0)),
                pl.BlockSpec((Cout, 1), lambda i: (0, 0)),
                pl.BlockSpec((Kc_pad, tile_n), lambda i: (0, i)),
            ],
            out_specs=pl.BlockSpec((Cout, tile_n), lambda i: (0, i)),
        ),
        compiler_params=pltpu.CompilerParams(
            dimension_semantics=("parallel",),
            vmem_limit_bytes=32 * 1024 * 1024),
    )(w_fused, b_col, patches)

    out = out_flat[:, :N].reshape(Cout, B, Ho, Wo).astype(x_nchw.dtype)
    return jnp.transpose(out, (1, 0, 2, 3))                        # (B, Cout, Ho, Wo)


def _reference(x_nchw, weight, bias, padding=1):
    """Pure-JAX reference of the same forward (AddCoords + Conv2d)."""
    B, C, H, W = x_nchw.shape
    yy = (jnp.arange(H, dtype=x_nchw.dtype) / H)[None, None, :, None]
    yy = jnp.broadcast_to(yy, (B, 1, H, W))
    xc = jnp.concatenate([x_nchw, yy], axis=1)
    out = jax.lax.conv_general_dilated(
        xc, weight, window_strides=(1, 1),
        padding=[(padding, padding), (padding, padding)],
        dimension_numbers=("NCHW", "OIHW", "NCHW"))
    return out + bias[None, :, None, None]


if __name__ == "__main__":
    key = jax.random.PRNGKey(0)
    k_x, k_w, k_b = jax.random.split(key, 3)

    # CoordConv2d(in_channels=4, out_channels=8, kernel_size=3, padding=1)
    B, C, H, W = 2, 4, 16, 16
    Cout, K = 8, 3
    Cin = C + 1                                   # +1 coord channel
    fan_in = Cin * K * K
    bound = 1.0 / (fan_in ** 0.5)                 # PyTorch Conv2d default init range

    x = jax.random.normal(k_x, (B, C, H, W), dtype=jnp.float32)
    weight = jax.random.uniform(k_w, (Cout, Cin, K, K),
                                minval=-bound, maxval=bound, dtype=jnp.float32)
    bias = jax.random.uniform(k_b, (Cout,),
                              minval=-bound, maxval=bound, dtype=jnp.float32)

    out = coord_conv2d(x, weight, bias, padding=1)
    out = jax.block_until_ready(out)

    ref = _reference(x, weight, bias, padding=1)
    assert out.shape == (B, Cout, H, W)
    assert jnp.allclose(out, ref, atol=1e-4, rtol=1e-5), \
        float(jnp.max(jnp.abs(out - ref)))
    print("KERNEL_OK")
</pallas_src>

<mosaic_0001>
module attributes {stable_mosaic.version = 11 : i64} {
  func.func @_coordconv_gemm_kernel(%arg0: i32, %arg1: memref<8x48xf32, #tpu.memory_space<vmem>>, %arg2: memref<8x1xf32, #tpu.memory_space<vmem>>, %arg3: memref<48x512xf32, #tpu.memory_space<vmem>>, %arg4: memref<8x512xf32, #tpu.memory_space<vmem>>) attributes {dimension_semantics = [#tpu.dimension_semantics<parallel>], iteration_bounds = array<i64: 1>, scalar_prefetch = 0 : i64, scratch_operands = 0 : i64, tpu.core_type = #tpu.core_type<tc>, window_params = [{pipeline_mode = #tpu.pipeline_mode<synchronous>, transform_indices = @transform_0, window_bounds = array<i64: 8, 48>}, {pipeline_mode = #tpu.pipeline_mode<synchronous>, transform_indices = @transform_1, window_bounds = array<i64: 8, 1>}, {transform_indices = @transform_2, window_bounds = array<i64: 48, 512>}, {transform_indices = @transform_3, window_bounds = array<i64: 8, 512>}]} {
    %c0 = arith.constant 0 : index
    %c0_0 = arith.constant 0 : index
    %0 = vector.load %arg1[%c0, %c0_0] : memref<8x48xf32, #tpu.memory_space<vmem>>, vector<8x48xf32>
    %c0_1 = arith.constant 0 : index
    %c0_2 = arith.constant 0 : index
    %1 = vector.load %arg3[%c0_1, %c0_2] : memref<48x512xf32, #tpu.memory_space<vmem>>, vector<48x512xf32>
    %cst = arith.constant dense<0.000000e+00> : vector<8x512xf32>
    %2 = tpu.matmul %0, %1, %cst {dimension_numbers = #tpu.dot_dimension_numbers<[1], [0], [0], [1], [0, 0, 1, 1], [], []>} : vector<8x48xf32>, vector<48x512xf32>, vector<8x512xf32> -> vector<8x512xf32>
    %c0_3 = arith.constant 0 : index
    %c0_4 = arith.constant 0 : index
    %3 = vector.load %arg2[%c0_3, %c0_4] : memref<8x1xf32, #tpu.memory_space<vmem>>, vector<8x1xf32>
    %4 = vector.broadcast %3 : vector<8x1xf32> to vector<8x512xf32>
    %5 = arith.addf %2, %4 : vector<8x512xf32>
    %c0_5 = arith.constant 0 : index
    %c0_6 = arith.constant 0 : index
    %6 = vector.load %arg4[%c0_5, %c0_6] : memref<8x512xf32, #tpu.memory_space<vmem>>, vector<8x512xf32>
    tpu.vector_store %arg4[%c0_5, %c0_6], %5 {strides = array<i32>} : memref<8x512xf32, #tpu.memory_space<vmem>>, vector<8x512xf32>,
    return
  }
  func.func @transform_0(%arg0: i32) -> (i32, i32) {
    %c0_i32 = arith.constant 0 : i32
    %c0_i32_0 = arith.constant 0 : i32
    %c0_i32_1 = arith.constant 0 : i32
    return %c0_i32, %c0_i32_0 : i32, i32
  }
  func.func @transform_1(%arg0: i32) -> (i32, i32) {
    %c0_i32 = arith.constant 0 : i32
    %c0_i32_0 = arith.constant 0 : i32
    %c0_i32_1 = arith.constant 0 : i32
    return %c0_i32, %c0_i32_0 : i32, i32
  }
  func.func @transform_2(%arg0: i32) -> (i32, i32) {
    %c0_i32 = arith.constant 0 : i32
    %c0_i32_0 = arith.constant 0 : i32
    return %c0_i32, %arg0 : i32, i32
  }
  func.func @transform_3(%arg0: i32) -> (i32, i32) {
    %c0_i32 = arith.constant 0 : i32
    %c0_i32_0 = arith.constant 0 : i32
    return %c0_i32, %arg0 : i32, i32
  }
}

</mosaic_0001>

<llo_original>
// kernel: tpu_custom_call.1
$region0: #{tpu_custom_call.1}
  #allocation0 [shape = 'u32[]', space=smem, size = 0x4, offset = 0x4, fixed_abs, tag = 'smem constant byte address 0x4 - core index']
  #allocation1 [shape = 'u32[144,128]{1,0:T(1,128)}', space=vmem, size = 0x12000, scoped, tag = 'internal scratch']
  %s0 = inlined_call_operand.vmem [shape: f32[8,48], index: 0, kind: input, shape index: {}]
  %s1 = inlined_call_operand.vmem [shape: f32[8,1], index: 1, kind: input, shape index: {}]
  %s2 = inlined_call_operand.hbm [shape: f32[48,512], index: 2, kind: input, shape index: {}]
  %s3 = inlined_call_operand.hbm [shape: f32[8,512], index: 3, kind: output, shape index: {}]
  %s4 = sld [smem:[#allocation0]]
  $region26: #{tpu_custom_call.1} parent=0
    _
  %s6 = ssub.s32 1, %s4
  %s7 = scalar_select 0, %s6, %s4
  $region1: #{tpu_custom_call.1} parent=0
    #allocation2 [shape = 'u8[98304]{0}', space=vmem, size = 0x18000, scoped, tag = 'input window, operand 2, single buffered']
    #allocation3 [shape = 's32[1]{0}', space=sflag, size = 0x4, scoped, tag = 'scoped memory for tpu_custom_call.1']
    #allocation4 [shape = 's32[1]{0}', space=sflag, size = 0x4, scoped, tag = 'scoped memory for tpu_custom_call.1']
    #allocation5 [shape = 'u8[16384]{0}', space=vmem, size = 0x4000, scoped, tag = 'output window, operand 0, single buffered']
    %8 = vsyncpa [#allocation3], 0
    %9 = vsyncpa [#allocation4], 0
    // Predicated region
    $region2: #{tpu_custom_call.1} parent=1 // pred_check
      _
    $region3: #{tpu_custom_call.1} parent=1 // pred_check_branch
      %11 = sbr.rel (0) target = $region5
    $region4: #{tpu_custom_call.1} parent=1 // pred_region
      _
    $region5: #{tpu_custom_call.1} parent=1 // pred_fallthru
      _
    // Predicated region
    $region6: #{tpu_custom_call.1} parent=1 // pred_check
      _
    $region7: #{tpu_custom_call.1} parent=1 // pred_check_branch
      %13 = sbr.rel (0) target = $region9
    $region8: #{tpu_custom_call.1} parent=1 // pred_region
      _
    $region9: #{tpu_custom_call.1} parent=1 // pred_fallthru
      _
    // Predicated region
    $region10: #{tpu_custom_call.1} parent=1 // pred_check
      _
    $region11: #{tpu_custom_call.1} parent=1 // pred_check_branch
      %15 = sbr.rel (0) target = $region13
    $region12: #{tpu_custom_call.1} parent=1 // pred_region
      %s17 = ssub.s32 3072, 3072
      %18 = vsyncadd [#allocation3], %s17
      %s19 = sshll.u32 [#allocation2], 4
      %s20 = int_to_ptr.vmem [resolvable:$true] %s19
      %25 = dma.hbm_to_vmem [thread:$0]  %s2, 3072, %s20, [#allocation3], 512, 512, 32
    $region13: #{tpu_custom_call.1} parent=1 // pred_fallthru
      _
    // Predicated region
    $region14: #{tpu_custom_call.1} parent=1 // pred_check
      _
    $region15: #{tpu_custom_call.1} parent=1 // pred_check_branch
      %27 = sbr.rel (0) target = $region17
    $region16: #{tpu_custom_call.1} parent=1 // pred_region
      %28 = dma.done [#allocation3], 3072
    $region17: #{tpu_custom_call.1} parent=1 // pred_fallthru
      _
    %v29 = vld [vmem:[%s0] sm:$0xff]
    %v30 = vld [vmem:[#allocation2] sm:$0xff]
    %v31 = vld [vmem:[#allocation2 + $0x8] sm:$0xff]
    %v32 = vld [vmem:[#allocation2 + $0x10] sm:$0xff]
    %v33 = vld [vmem:[#allocation2 + $0x18] sm:$0xff]
    %v34 = vld [vmem:[#allocation2 + $0x20] sm:$0xff]
    %v35 = vld [vmem:[#allocation2 + $0x28] sm:$0xff]
    %v36 = vld [vmem:[#allocation2 + $0x30] sm:$0xff]
    %v37 = vld [vmem:[#allocation2 + $0x38] sm:$0xff]
    %v38 = vld [vmem:[#allocation2 + $0x40] sm:$0xff]
    %v39 = vld [vmem:[#allocation2 + $0x48] sm:$0xff]
    %v40 = vld [vmem:[#allocation2 + $0x50] sm:$0xff]
    %v41 = vld [vmem:[#allocation2 + $0x58] sm:$0xff]
    %v42 = vld [vmem:[#allocation2 + $0x60] sm:$0xff]
    %v43 = vld [vmem:[#allocation2 + $0x68] sm:$0xff]
    %v44 = vld [vmem:[#allocation2 + $0x70] sm:$0xff]
    %v45 = vld [vmem:[#allocation2 + $0x78] sm:$0xff]
    %v46 = vld [vmem:[#allocation2 + $0x80] sm:$0xff]
    %v47 = vld [vmem:[#allocation2 + $0x88] sm:$0xff]
    %v48 = vld [vmem:[#allocation2 + $0x90] sm:$0xff]
    %v49 = vld [vmem:[#allocation2 + $0x98] sm:$0xff]
    %v50 = vld [vmem:[#allocation2 + $0xa0] sm:$0xff]
    %v51 = vld [vmem:[#allocation2 + $0xa8] sm:$0xff]
    %v52 = vld [vmem:[#allocation2 + $0xb0] sm:$0xff]
    %v53 = vld [vmem:[#allocation2 + $0xb8] sm:$0xff]
    %v54 = vld [vmem:[%s1] sm:$0xff]
    %56 = vset.pattern.permute.xlu0 0
    %57 = vperm.xlu0 %56, %v54
    %v58 = vpop.permute.xlu0 %57
    %vm60 = vcmask 392192
    %v62 = vsel %vm60, %v29, 0
    %64 = vmatprep.subr.mxu0 %v31
    %65 = vmatpush1.msra.mxu0 %v30
    %66 = vmatprep.subr.mxu0 %v35
    %67 = vmatpush1.msra.mxu0 %v34
    %68 = vmatprep.subr.mxu0 %v39
    %69 = vmatpush1.msra.mxu0 %v38
    %70 = vmatprep.subr.mxu0 %v43
    %71 = vmatpush1.msra.mxu0 %v42
    %72 = vmatprep.subr.mxu0 %v47
    %73 = vmatpush1.msra.mxu0 %v46
    %74 = vmatprep.subr.mxu0 %v51
    %75 = vmatpush1.msra.mxu0 %v50
    %76 = vmatprep.subr.mxu0 0.0
    %77 = vmatpush1.msra.mxu0 0.0
    %78 = vmatprep.subr.mxu0 0.0
    %79 = vmatpush1.msra.mxu0 0.0
    %80 = vmatprep.subr.mxu0 0.0
    %81 = vmatpush1.msra.mxu0 0.0
    %82 = vmatprep.subr.mxu0 0.0
    %83 = vmatpush1.msra.mxu0 0.0
    %84 = vmatprep.subr.mxu0 0.0
    %85 = vmatpush1.msra.mxu0 0.0
    %86 = vmatprep.subr.mxu0 0.0
    %87 = vmatpush1.msra.mxu0 0.0
    %88 = vmatprep.subr.mxu0 0.0
    %89 = vmatpush1.msra.mxu0 0.0
    %90 = vmatprep.subr.mxu0 0.0
    %91 = vmatpush1.msra.mxu0 0.0
    %92 = vmatprep.subr.mxu0 0.0
    %93 = vmatpush1.msra.mxu0 0.0
    %94 = vmatprep.subr.mxu0 0.0
    %95 = vmatpush1.msra.mxu0 0.0
    %96 = vmatprep.subr.mxu0 0.0
    %97 = vmatpush1.msra.mxu0 0.0
    %98 = vmatprep.subr.mxu0 0.0
    %99 = vmatpush1.msra.mxu0 0.0
    %100 = vmatprep.subr.mxu0 0.0
    %101 = vmatpush1.msra.mxu0 0.0
    %102 = vmatprep.subr.mxu0 0.0
    %103 = vmatpush1.msra.mxu0 0.0
    %104 = vmatprep.subr.mxu0 0.0
    %105 = vmatpush1.msra.mxu0 0.0
    %106 = vmatprep.subr.mxu0 0.0
    %107 = vmatpush1.msra.mxu0 0.0
    %108 = vmatprep.subr.mxu0 0.0
    %109 = vmatpush1.msra.mxu0 0.0
    %110 = vmatprep.subr.mxu0 0.0
    %111 = vmatpush1.msra.mxu0 0.0
    %112 = vmatprep.subr.mxu0 0.0
    %113 = vmatpush1.msra.mxu0 0.0
    %114 = vmatprep.subr.mxu0 0.0
    %115 = vmatpush1.msra.mxu0 0.0
    %116 = vmatprep.subr.mxu0 0.0
    %117 = vmatpush1.msra.mxu0 0.0
    %118 = vmatprep.subr.mxu0 0.0
    %119 = vmatpush1.msra.mxu0 0.0
    %120 = vmatprep.subr.mxu0 0.0
    %121 = vmatpush1.msra.mxu0 0.0
    %122 = vmatprep.subr.mxu0 0.0
    %123 = vmatpush1.msra.mxu0 0.0
    %124 = vmatprep.subr.mxu0 0.0
    %125 = vmatpush1.msra.mxu0 0.0
    %126 = vmatprep.subr.mxu0 0.0
    %127 = vmatpush1.msra.mxu0 0.0
    %128 = vmatprep.mubr.f32.mxu0 0.0
    %129 = vmatmul.mubr.f32.gmra.mrb[0].mxu0 %v62
    %v130 = vpop.f32.mrb[0].mxu0
    %v131 = vadd.f32 %v58, %v130
    %v132 = vpop.f32.mrb[0].mxu0
    %v133 = vadd.f32 %v58, %v132
    %134 = vdwg.mxu0
    %135 = vmatprep.subr.mxu0 %v33
    %136 = vmatpush1.msra.mxu0 %v32
    %137 = vmatprep.subr.mxu0 %v37
    %138 = vmatpush1.msra.mxu0 %v36
    %139 = vmatprep.subr.mxu0 %v41
    %140 = vmatpush1.msra.mxu0 %v40
    %141 = vmatprep.subr.mxu0 %v45
    %142 = vmatpush1.msra.mxu0 %v44
    %143 = vmatprep.subr.mxu0 %v49
    %144 = vmatpush1.msra.mxu0 %v48
    %145 = vmatprep.subr.mxu0 %v53
    %146 = vmatpush1.msra.mxu0 %v52
    %147 = vmatprep.subr.mxu0 0.0
    %148 = vmatpush1.msra.mxu0 0.0
    %149 = vmatprep.subr.mxu0 0.0
    %150 = vmatpush1.msra.mxu0 0.0
    %151 = vmatprep.subr.mxu0 0.0
    %152 = vmatpush1.msra.mxu0 0.0
    %153 = vmatprep.subr.mxu0 0.0
    %154 = vmatpush1.msra.mxu0 0.0
    %155 = vmatprep.subr.mxu0 0.0
    %156 = vmatpush1.msra.mxu0 0.0
    %157 = vmatprep.subr.mxu0 0.0
    %158 = vmatpush1.msra.mxu0 0.0
    %159 = vmatprep.subr.mxu0 0.0
    %160 = vmatpush1.msra.mxu0 0.0
    %161 = vmatprep.subr.mxu0 0.0
    %162 = vmatpush1.msra.mxu0 0.0
    %163 = vmatprep.subr.mxu0 0.0
    %164 = vmatpush1.msra.mxu0 0.0
    %165 = vmatprep.subr.mxu0 0.0
    %166 = vmatpush1.msra.mxu0 0.0
    %167 = vmatprep.subr.mxu0 0.0
    %168 = vmatpush1.msra.mxu0 0.0
    %169 = vmatprep.subr.mxu0 0.0
    %170 = vmatpush1.msra.mxu0 0.0
    %171 = vmatprep.subr.mxu0 0.0
    %172 = vmatpush1.msra.mxu0 0.0
    %173 = vmatprep.subr.mxu0 0.0
    %174 = vmatpush1.msra.mxu0 0.0
    %175 = vmatprep.subr.mxu0 0.0
    %176 = vmatpush1.msra.mxu0 0.0
    %177 = vmatprep.subr.mxu0 0.0
    %178 = vmatpush1.msra.mxu0 0.0
    %179 = vmatprep.subr.mxu0 0.0
    %180 = vmatpush1.msra.mxu0 0.0
    %181 = vmatprep.subr.mxu0 0.0
    %182 = vmatpush1.msra.mxu0 0.0
    %183 = vmatprep.subr.mxu0 0.0
    %184 = vmatpush1.msra.mxu0 0.0
    %185 = vmatprep.subr.mxu0 0.0
    %186 = vmatpush1.msra.mxu0 0.0
    %187 = vmatprep.subr.mxu0 0.0
    %188 = vmatpush1.msra.mxu0 0.0
    %189 = vmatprep.subr.mxu0 0.0
    %190 = vmatpush1.msra.mxu0 0.0
    %191 = vmatprep.subr.mxu0 0.0
    %192 = vmatpush1.msra.mxu0 0.0
    %193 = vmatprep.subr.mxu0 0.0
    %194 = vmatpush1.msra.mxu0 0.0
    %195 = vmatprep.subr.mxu0 0.0
    %196 = vmatpush1.msra.mxu0 0.0
    %197 = vmatprep.subr.mxu0 0.0
    %198 = vmatpush1.msra.mxu0 0.0
    %199 = vmatprep.mubr.f32.mxu0 0.0
    %200 = vmatmul.mubr.f32.gmra.mrb[0].mxu0 %v62
    %v201 = vpop.f32.mrb[0].mxu0
    %v202 = vadd.f32 %v58, %v201
    %v203 = vpop.f32.mrb[0].mxu0
    %v204 = vadd.f32 %v58, %v203
    %205 = vdwg.mxu0
    %206 = vst [vmem:[#allocation5] sm:$0xff] %v131
    %207 = vst [vmem:[#allocation5 + $0x8] sm:$0xff] %v133
    %208 = vst [vmem:[#allocation5 + $0x10] sm:$0xff] %v202
    %209 = vst [vmem:[#allocation5 + $0x18] sm:$0xff] %v204
    // Predicated region
    $region18: #{tpu_custom_call.1} parent=1 // pred_check
      _
    $region19: #{tpu_custom_call.1} parent=1 // pred_check_branch
      %211 = sbr.rel (0) target = $region21
    $region20: #{tpu_custom_call.1} parent=1 // pred_region
      %s213 = ssub.s32 512, 512
      %214 = vsyncadd [#allocation4], %s213
      %s216 = sshll.u32 [#allocation5], 4
      %s217 = int_to_ptr.vmem [resolvable:$true] %s216
      %219 = dma.vmem_to_hbm [thread:$0]  %s217, 512, %s3, [#allocation4]
    $region21: #{tpu_custom_call.1} parent=1 // pred_fallthru
      _
    // Predicated region
    $region22: #{tpu_custom_call.1} parent=1 // pred_check
      _
    $region23: #{tpu_custom_call.1} parent=1 // pred_check_branch
      %221 = sbr.rel (0) target = $region25
    $region24: #{tpu_custom_call.1} parent=1 // pred_region
      %222 = dma.done [#allocation4], 512
    $region25: #{tpu_custom_call.1} parent=1 // pred_fallthru
      _
    %223 = vsyncpa [#allocation3], 1
    %224 = vsyncpa [#allocation4], 1

</llo_original>
